<compile_context>
chip_gen: v6e
topology: v6e:2x2x1
jax: 0.10.0
libtpu: 0.0.40
codegen_flags: <defaults>
</compile_context>

<pallas_src>
import math

import jax
import jax.numpy as jnp
from jax import lax
from jax.experimental import pallas as pl
from jax.experimental.pallas import tpu as pltpu


DEFAULT_MASK_VALUE = -0.7 * float(jnp.finfo(jnp.float32).max)
VMEM_LIMIT_BYTES = 64 * 1024 * 1024  # explicit scoped-VMEM budget (safe on v5e/v6e/v7x)


def _round_up(x, m):
    return ((x + m - 1) // m) * m


# --------------------------------------------------------------------------
# Stage 1: fused Q/K/V projection (one NT matmul; no in-kernel transpose).
# --------------------------------------------------------------------------
def _qkv_proj_kernel(x_ref, w_ref, qkv_ref):
    # x_ref: (1, blk, dm_pad); w_ref: (3*d_pad, dm_pad) in nn.Linear [out, in] layout.
    x = x_ref[0]
    qkv = lax.dot_general(x, w_ref[...], (((1,), (1,)), ((), ())),
                          preferred_element_type=jnp.float32)
    qkv_ref[0] = qkv.astype(qkv_ref.dtype)


# --------------------------------------------------------------------------
# Stage 2: causal flash attention with online softmax.
# --------------------------------------------------------------------------
def _flash_kernel(q_ref, k_ref, v_ref, o_ref, m_sc, l_sc, acc_sc):
    qi = pl.program_id(1)
    ki = pl.program_id(2)

    @pl.when(ki == 0)
    def _init():
        m_sc[...] = jnp.full_like(m_sc, -jnp.inf)
        l_sc[...] = jnp.zeros_like(l_sc)
        acc_sc[...] = jnp.zeros_like(acc_sc)

    # Above-diagonal tiles (ki > qi) are pure no-ops: no compute here, and no
    # DMA either because the K/V index_maps clamp to min(ki, qi).
    @pl.when(ki <= qi)
    def _compute():
        q = q_ref[0]                      # (blk, d_pad), softmax scale already folded in
        k = k_ref[0]                      # (blk, d_pad)
        v = v_ref[0]                      # (blk, d_pad)

        # NT contraction over the feature dim — no k.T / XLU transpose.
        s = lax.dot_general(q, k, (((1,), (1,)), ((), ())),
                            preferred_element_type=jnp.float32)   # (blk, blk)

        def update(s):
            m_prev = m_sc[...]                                    # (blk, 128)
            row_max = jnp.max(s, axis=-1, keepdims=True)          # (blk, 1)
            m_next = jnp.maximum(m_prev, row_max)                 # (blk, 128)
            alpha = jnp.exp(m_prev - m_next)                      # (blk, 128)
            p = jnp.exp(s - m_next[:, :1])                        # (blk, blk)
            l_sc[...] = alpha * l_sc[...] + jnp.sum(p, axis=-1, keepdims=True)
            acc_sc[...] = alpha[:, :1] * acc_sc[...] + jnp.dot(
                p.astype(v.dtype), v, preferred_element_type=jnp.float32)
            m_sc[...] = m_next

        # Causal mask only on diagonal-intersecting tiles.  With blk_q == blk_k
        # the global offsets cancel, so local iotas suffice.  Every row keeps at
        # least its diagonal element unmasked, so the large-finite mask value is
        # NaN-free.
        @pl.when(ki == qi)
        def _diag():
            row = lax.broadcasted_iota(jnp.int32, s.shape, 0)
            col = lax.broadcasted_iota(jnp.int32, s.shape, 1)
            update(jnp.where(col > row, DEFAULT_MASK_VALUE, s))

        @pl.when(ki < qi)
        def _below():
            update(s)

    # The diagonal tile is the last contributing one (blk_q == blk_k), so
    # finalize there; remaining ki > qi steps leave the resident output block
    # untouched and Pallas writes it back when qi/b change.
    @pl.when(ki == qi)
    def _finalize():
        l = l_sc[...][:, :1]
        r = pl.reciprocal(l, approx=True)   # EUP slot
        r = r * (2.0 - l * r)               # one Newton step -> ~f32-exact
        o_ref[0] = (acc_sc[...] * r).astype(o_ref.dtype)


# --------------------------------------------------------------------------
# Wrapper
# --------------------------------------------------------------------------
def decoder_self_attention(x, w_q, w_k, w_v, *, blk=256, qkv_dtype=None):
    """x: [B, S, d_model]; w_q/w_k: [d_k, d_model]; w_v: [d_v, d_model].

    qkv_dtype: dtype of the intermediate Q/K/V (default: x.dtype).  Pass
    jnp.bfloat16 to halve inter-stage HBM traffic / use the native bf16 MXU
    path when the looser tolerance is acceptable.
    """
    B, S, d_model = x.shape
    d_k = w_q.shape[0]
    d_v = w_v.shape[0]
    # Matches the PyTorch module exactly: scale uses x.shape[-1] (= d_model).
    scale = 1.0 / math.sqrt(d_model)
    if qkv_dtype is None:
        qkv_dtype = x.dtype

    # Tile size: 256 feeds v6e/v7x's 256-wide MXU and halves KV re-reads vs 128,
    # but never exceed the (128-rounded) sequence length.
    blk = max(128, min(blk, _round_up(S, 128)))
    s_pad = _round_up(S, blk)
    dm_pad = _round_up(d_model, 128)
    d_pad = _round_up(max(d_k, d_v), 128)   # common feature pad for Q/K/V
    n_s = s_pad // blk
    dt = x.dtype

    xp = jnp.pad(x, ((0, 0), (0, s_pad - S), (0, dm_pad - d_model)))
    # Fused weight [3*d_pad, dm_pad]; softmax scale folded into the Q rows once.
    wq = jnp.pad(w_q * jnp.asarray(scale, w_q.dtype),
                 ((0, d_pad - d_k), (0, dm_pad - d_model)))
    wk = jnp.pad(w_k, ((0, d_pad - d_k), (0, dm_pad - d_model)))
    wv = jnp.pad(w_v, ((0, d_pad - d_v), (0, dm_pad - d_model)))
    w_fused = jnp.concatenate([wq, wk, wv], axis=0).astype(dt)

    # ---- Stage 1: fused QKV projection ----
    # TODO(synk): on VMEM-tight chips, single-buffer the constant weight spec
    # (pipeline_mode=pl.Buffered(1)) and/or tile the d_model contraction.
    qkv = pl.pallas_call(
        _qkv_proj_kernel,
        out_shape=jax.ShapeDtypeStruct((B, s_pad, 3 * d_pad), qkv_dtype),
        grid_spec=pltpu.PrefetchScalarGridSpec(
            num_scalar_prefetch=0,
            grid=(B, n_s),
            in_specs=[
                pl.BlockSpec((1, blk, dm_pad), lambda b, si: (b, si, 0)),
                pl.BlockSpec((3 * d_pad, dm_pad), lambda b, si: (0, 0)),
            ],
            out_specs=pl.BlockSpec((1, blk, 3 * d_pad), lambda b, si: (b, si, 0)),
        ),
        compiler_params=pltpu.CompilerParams(
            dimension_semantics=("parallel", "parallel"),
            vmem_limit_bytes=VMEM_LIMIT_BYTES),
    )(xp, w_fused)

    # ---- Stage 2: causal flash attention ----
    # Q/K/V are column-block slices (0/1/2) of the single fused array; the K/V
    # block index is clamped to min(ki, qi) so above-diagonal steps do no DMA.
    out = pl.pallas_call(
        _flash_kernel,
        out_shape=jax.ShapeDtypeStruct((B, s_pad, d_pad), dt),
        grid_spec=pltpu.PrefetchScalarGridSpec(
            num_scalar_prefetch=0,
            grid=(B, n_s, n_s),
            in_specs=[
                pl.BlockSpec((1, blk, d_pad), lambda b, qi, ki: (b, qi, 0)),
                pl.BlockSpec((1, blk, d_pad),
                             lambda b, qi, ki: (b, jnp.minimum(ki, qi), 1)),
                pl.BlockSpec((1, blk, d_pad),
                             lambda b, qi, ki: (b, jnp.minimum(ki, qi), 2)),
            ],
            out_specs=pl.BlockSpec((1, blk, d_pad), lambda b, qi, ki: (b, qi, 0)),
            scratch_shapes=[
                pltpu.VMEM((blk, 128), jnp.float32),    # m (running max, lane-dense)
                pltpu.VMEM((blk, 128), jnp.float32),    # l (running denom, lane-dense)
                pltpu.VMEM((blk, d_pad), jnp.float32),  # acc (f32 accumulator)
            ],
        ),
        compiler_params=pltpu.CompilerParams(
            dimension_semantics=("parallel", "parallel", "arbitrary"),
            vmem_limit_bytes=VMEM_LIMIT_BYTES),
    )(qkv, qkv, qkv)

    return out[:, :S, :d_v]


# --------------------------------------------------------------------------
# Reference + test
# --------------------------------------------------------------------------
def _reference(x, w_q, w_k, w_v):
    q = x @ w_q.T
    k = x @ w_k.T
    v = x @ w_v.T
    d_model = x.shape[-1]
    a = (q @ jnp.swapaxes(k, -2, -1)) / jnp.sqrt(jnp.float32(d_model))
    s = a.shape[-1]
    mask = jnp.triu(jnp.full((s, s), -jnp.inf, dtype=a.dtype), k=1)
    a = a + mask
    return jax.nn.softmax(a, axis=-1) @ v


if __name__ == "__main__":
    B, S, d_model, d_k, d_v = 2, 8, 32, 16, 16

    key = jax.random.PRNGKey(0)
    kx, kq, kk, kv = jax.random.split(key, 4)

    x = jax.random.normal(kx, (B, S, d_model), dtype=jnp.float32)
    bound = 1.0 / math.sqrt(d_model)
    w_q = jax.random.uniform(kq, (d_k, d_model), jnp.float32, -bound, bound)
    w_k = jax.random.uniform(kk, (d_k, d_model), jnp.float32, -bound, bound)
    w_v = jax.random.uniform(kv, (d_v, d_model), jnp.float32, -bound, bound)

    out = decoder_self_attention(x, w_q, w_k, w_v)
    out = jax.block_until_ready(out)

    ref = _reference(x, w_q, w_k, w_v)
    assert out.shape == (B, S, d_v)
    assert jnp.allclose(out, ref, atol=2e-5, rtol=2e-5), "mismatch vs reference"

    print("KERNEL_OK")
</pallas_src>

<mosaic_0001>
module attributes {stable_mosaic.version = 11 : i64} {
  func.func @_qkv_proj_kernel(%arg0: i32, %arg1: i32, %arg2: memref<1x128x128xf32, #tpu.memory_space<vmem>>, %arg3: memref<384x128xf32, #tpu.memory_space<vmem>>, %arg4: memref<1x128x384xf32, #tpu.memory_space<vmem>>) attributes {dimension_semantics = [#tpu.dimension_semantics<parallel>, #tpu.dimension_semantics<parallel>], iteration_bounds = array<i64: 2, 1>, scalar_prefetch = 0 : i64, scratch_operands = 0 : i64, tpu.core_type = #tpu.core_type<tc>, window_params = [{transform_indices = @transform_0, window_bounds = array<i64: 1, 128, 128>}, {pipeline_mode = #tpu.pipeline_mode<synchronous>, transform_indices = @transform_1, window_bounds = array<i64: 384, 128>}, {transform_indices = @transform_2, window_bounds = array<i64: 1, 128, 384>}]} {
    %c0 = arith.constant 0 : index
    %c0_0 = arith.constant 0 : index
    %c0_1 = arith.constant 0 : index
    %0 = vector.load %arg2[%c0, %c0_0, %c0_1] : memref<1x128x128xf32, #tpu.memory_space<vmem>>, vector<1x128x128xf32>
    %1 = vector.shape_cast %0 : vector<1x128x128xf32> to vector<128x128xf32>
    %c0_2 = arith.constant 0 : index
    %c0_3 = arith.constant 0 : index
    %2 = vector.load %arg3[%c0_2, %c0_3] : memref<384x128xf32, #tpu.memory_space<vmem>>, vector<384x128xf32>
    %cst = arith.constant dense<0.000000e+00> : vector<128x384xf32>
    %3 = tpu.matmul %1, %2, %cst {dimension_numbers = #tpu.dot_dimension_numbers<[1], [1], [0], [0], [0, 0, 1, 0], [], []>} : vector<128x128xf32>, vector<384x128xf32>, vector<128x384xf32> -> vector<128x384xf32>
    %c0_4 = arith.constant 0 : index
    %c0_5 = arith.constant 0 : index
    %c0_6 = arith.constant 0 : index
    %4 = vector.load %arg4[%c0_4, %c0_5, %c0_6] : memref<1x128x384xf32, #tpu.memory_space<vmem>>, vector<1x128x384xf32>
    %5 = vector.shape_cast %4 : vector<1x128x384xf32> to vector<128x384xf32>
    %6 = vector.shape_cast %3 : vector<128x384xf32> to vector<1x128x384xf32>
    tpu.vector_store %arg4[%c0_4, %c0_5, %c0_6], %6 {strides = array<i32>} : memref<1x128x384xf32, #tpu.memory_space<vmem>>, vector<1x128x384xf32>,
    return
  }
  func.func @transform_0(%arg0: i32, %arg1: i32) -> (i32, i32, i32) {
    %c0_i32 = arith.constant 0 : i32
    %c0_i32_0 = arith.constant 0 : i32
    return %arg0, %arg1, %c0_i32 : i32, i32, i32
  }
  func.func @transform_1(%arg0: i32, %arg1: i32) -> (i32, i32) {
    %c0_i32 = arith.constant 0 : i32
    %c0_i32_0 = arith.constant 0 : i32
    %c0_i32_1 = arith.constant 0 : i32
    return %c0_i32, %c0_i32_0 : i32, i32
  }
  func.func @transform_2(%arg0: i32, %arg1: i32) -> (i32, i32, i32) {
    %c0_i32 = arith.constant 0 : i32
    %c0_i32_0 = arith.constant 0 : i32
    return %arg0, %arg1, %c0_i32 : i32, i32, i32
  }
}

</mosaic_0001>

<llo_original>
// kernel: tpu_custom_call.1
$region0: #{tpu_custom_call.1}
  #allocation0 [shape = 'u32[]', space=smem, size = 0x4, offset = 0x4, fixed_abs, tag = 'smem constant byte address 0x4 - core index']
  #allocation1 [shape = 'u32[144,128]{1,0:T(1,128)}', space=vmem, size = 0x12000, scoped, tag = 'internal scratch']
  %s0 = inlined_call_operand.hbm [shape: f32[2,128,128], index: 0, kind: input, shape index: {}]
  %s1 = inlined_call_operand.hbm [shape: f32[384,128], index: 1, kind: input, shape index: {}]
  %s2 = inlined_call_operand.hbm [shape: f32[2,128,384], index: 2, kind: output, shape index: {}]
  %s3 = sld [smem:[#allocation0]]
  $region49: #{tpu_custom_call.1} parent=0
    _
  %s5 = ssub.s32 1, %s3
  %s6 = scalar_select 0, %s5, %s3
  $region1: #{tpu_custom_call.1} parent=0
    #allocation2 [shape = 'u8[131072]{0}', space=vmem, size = 0x20000, scoped, tag = 'input window, operand 0']
    #allocation3 [shape = 's32[2]{0}', space=sflag, size = 0x8, scoped, tag = 'scoped memory for tpu_custom_call.1']
    #allocation4 [shape = 's32[2]{0}', space=sflag, size = 0x8, scoped, tag = 'scoped memory for tpu_custom_call.1']
    #allocation5 [shape = 'u8[196608]{0}', space=vmem, size = 0x30000, scoped, tag = 'input window, operand 1, single buffered']
    #allocation6 [shape = 's32[1]{0}', space=sflag, size = 0x4, scoped, tag = 'scoped memory for tpu_custom_call.1']
    #allocation7 [shape = 'u8[393216]{0}', space=vmem, size = 0x60000, scoped, tag = 'output window, operand 0']
    %7 = vsyncpa [#allocation3], 0
    %s8 = scalar_lea.sflag [#allocation3], 1
    %9 = vsyncpa %s8, 0
    %10 = vsyncpa [#allocation6], 0
    %11 = vsyncpa [#allocation4], 0
    %s12 = scalar_lea.sflag [#allocation4], 1
    %13 = vsyncpa %s12, 0
    loop: start=0, step=1, limit=4
    $region2: #{tpu_custom_call.1} parent=1 // loop_pre_header
      _
    $region3: #{tpu_custom_call.1} parent=1 // loop_header
      %s15 = sphi 0, %s19
      %p16 = scmp.ge.s32.totalorder %s15, 4
      %s22 = sphi 0, %s34
      %s23 = sphi 0, %s30
      %s24 = sphi 0, %s22
      %s25 = sphi 0, %s23
      %s26 = sphi 0, %s24
      %s27 = sphi 0, %s25
      %s39 = sphi 0, %s41
      %s42 = sphi 0, %s39
      %s43 = sphi 0, %s42
      %s59 = sphi 0, %s43
      %s63 = sphi 0, %s63
      %s65 = sphi 0, %s63
      %s66 = sphi 0, %s65
      %s80 = sphi 0, %s66
      %s88 = sphi 0, %s90
      %s91 = sphi 0, %s88
      %s92 = sphi 0, %s91
      %s108 = sphi 0, %s92
    $region4: #{tpu_custom_call.1} parent=1 // loop_header_branch
      %18 = sbr.rel (%p16) target = $region8
    $region5: #{tpu_custom_call.1} parent=1 // loop_body
      %s20 = ssub.s32 %s15, 1
      %s21 = ssub.s32 %s15, 2
      %s28 = sadd.s32 1, %s23
      %p29 = scmp.ge.s32.totalorder %s28, 1
      %s30 = scalar_select %p29, 0, %s28
      %s31 = sadd.s32 1, %s22
      %s32 = scalar_select %p29, %s31, %s22
      %p33 = scmp.ge.s32.totalorder %s32, 2
      %s34 = scalar_select %p33, 0, %s32
      %s35 = ssub.s32 %s22, %s34
      %s36 = ssub.s32 %s23, %s30
      %s37 = sor.u32 %s35, %s36
      %p38 = scmp.eq.s32.totalorder %s37, 0
      %s40 = sadd.s32 %s39, 1
      %s41 = scalar_select %p38, %s39, %s40
      %p44 = pneg %p38
      %p45 = scmp.eq.s32.totalorder %s15, 1
      %p46 = por %p44, %p45
      %p47 = scmp.ne.s32.totalorder %s39, %s42
      %p48 = scmp.eq.s32.totalorder %s15, 0
      %p49 = por %p47, %p48
      %p50 = scmp.ne.s32.totalorder %s39, %s42
      %p51 = scmp.eq.s32.totalorder %s20, 1
      %p52 = por %p50, %p51
      %p53 = scmp.ne.s32.totalorder %s42, %s43
      %p54 = scmp.eq.s32.totalorder %s20, 0
      %p55 = por %p53, %p54
      %p56 = scmp.ne.s32.totalorder %s42, %s43
      %p57 = scmp.eq.s32.totalorder %s21, 1
      %p58 = por %p56, %p57
      %p60 = scmp.ne.s32.totalorder %s43, %s59
      %p61 = scmp.eq.s32.totalorder %s21, 0
      %p62 = por %p60, %p61
      %s64 = sadd.s32 %s63, 1
      %p67 = scmp.eq.s32.totalorder %s15, 1
      %p68 = scmp.ne.s32.totalorder %s63, %s65
      %p69 = scmp.eq.s32.totalorder %s15, 0
      %p70 = por %p68, %p69
      %p71 = scmp.ne.s32.totalorder %s63, %s65
      %p72 = scmp.eq.s32.totalorder %s20, 1
      %p73 = por %p71, %p72
      %p74 = scmp.ne.s32.totalorder %s65, %s66
      %p75 = scmp.eq.s32.totalorder %s20, 0
      %p76 = por %p74, %p75
      %p77 = scmp.ne.s32.totalorder %s65, %s66
      %p78 = scmp.eq.s32.totalorder %s21, 1
      %p79 = por %p77, %p78
      %p81 = scmp.ne.s32.totalorder %s66, %s80
      %p82 = scmp.eq.s32.totalorder %s21, 0
      %p83 = por %p81, %p82
      %s84 = ssub.s32 %s22, %s34
      %s85 = ssub.s32 %s23, %s30
      %s86 = sor.u32 %s84, %s85
      %p87 = scmp.eq.s32.totalorder %s86, 0
      %s89 = sadd.s32 %s88, 1
      %s90 = scalar_select %p87, %s88, %s89
      %p93 = pneg %p87
      %p94 = scmp.eq.s32.totalorder %s15, 1
      %p95 = por %p93, %p94
      %p96 = scmp.ne.s32.totalorder %s88, %s91
      %p97 = scmp.eq.s32.totalorder %s15, 0
      %p98 = por %p96, %p97
      %p99 = scmp.ne.s32.totalorder %s88, %s91
      %p100 = scmp.eq.s32.totalorder %s20, 1
      %p101 = por %p99, %p100
      %p102 = scmp.ne.s32.totalorder %s91, %s92
      %p103 = scmp.eq.s32.totalorder %s20, 0
      %p104 = por %p102, %p103
      %p105 = scmp.ne.s32.totalorder %s91, %s92
      %p106 = scmp.eq.s32.totalorder %s21, 1
      %p107 = por %p105, %p106
      %p109 = scmp.ne.s32.totalorder %s92, %s108
      %p110 = scmp.eq.s32.totalorder %s21, 0
      %p111 = por %p109, %p110
      %p112 = scmp.le.s32.totalorder 1, %s15
      %p113 = scmp.lt.s32.totalorder %s15, 3
      %p114 = pnand %p112, %p113
      %p115 = pneg %p114
      // Predicated region
      $region9: #{tpu_custom_call.1} parent=5 // pred_check
        _
      $region10: #{tpu_custom_call.1} parent=5 // pred_check_branch
        %117 = sbr.rel (%p114) target = $region12
      $region11: #{tpu_custom_call.1} parent=5 // pred_region
        %s118 = ssub.s32 %s15, 1
        // Predicated region
        $region13: #{tpu_custom_call.1} parent=11 // pred_check
          %p119 = pneg %p76
        $region14: #{tpu_custom_call.1} parent=11 // pred_check_branch
          %121 = sbr.rel (%p119) target = $region16
        $region15: #{tpu_custom_call.1} parent=11 // pred_region
          %s123 = ssub.s32 6144, 6144
          %124 = vsyncadd [#allocation6], %s123
          %s125 = sshll.u32 [#allocation5], 4
          %s126 = int_to_ptr.vmem [resolvable:$true] %s125
          %131 = dma.hbm_to_vmem [thread:$0]  %s1, 6144, %s126, [#allocation6], 128, 128, 8
        $region16: #{tpu_custom_call.1} parent=11 // pred_fallthru
          _
      $region12: #{tpu_custom_call.1} parent=5 // pred_fallthru
        _
      %p132 = scmp.lt.s32.totalorder %s15, 2
      // Predicated region
      $region17: #{tpu_custom_call.1} parent=5 // pred_check
        %p133 = pneg %p132
      $region18: #{tpu_custom_call.1} parent=5 // pred_check_branch
        %135 = sbr.rel (%p133) target = $region20
      $region19: #{tpu_custom_call.1} parent=5 // pred_region
        // Predicated region
        $region21: #{tpu_custom_call.1} parent=19 // pred_check
          %p136 = pneg %p49
        $region22: #{tpu_custom_call.1} parent=19 // pred_check_branch
          %138 = sbr.rel (%p136) target = $region24
        $region23: #{tpu_custom_call.1} parent=19 // pred_region
          %s139 = sand.u32 %s39, 1
          %s140 = scalar_lea.sflag [#allocation3], %s139
          %s141 = sand.u32 %s39, 1
          %s142 = smul.addr %s141, 128
          %s143 = scalar_lea.vmem [#allocation2], %s142
          %s144 = smul.u32 16, %s23
          %s146 = ssub.s32 2048, 2048
          %147 = vsyncadd %s140, %s146
          %s148 = smul.addr %s22, 16
          %s149 = sadd.s32 %s144, %s148
          %s150 = smul.addr %s149, 128
          %s151 = scalar_lea.hbm %s0, %s150
          %s152 = sshll.u32 %s143, 4
          %s153 = int_to_ptr.vmem [resolvable:$true] %s152
          %158 = dma.hbm_to_vmem [thread:$0]  %s151, 2048, %s153, %s140, 128, 128, 8
        $region24: #{tpu_custom_call.1} parent=19 // pred_fallthru
          _
      $region20: #{tpu_custom_call.1} parent=5 // pred_fallthru
        _
      %p159 = scmp.le.s32.totalorder 1, %s15
      %p160 = scmp.lt.s32.totalorder %s15, 3
      %p161 = pnand %p159, %p160
      %p162 = pneg %p161
      // Predicated region
      $region25: #{tpu_custom_call.1} parent=5 // pred_check
        _
      $region26: #{tpu_custom_call.1} parent=5 // pred_check_branch
        %164 = sbr.rel (%p161) target = $region28
      $region27: #{tpu_custom_call.1} parent=5 // pred_region
        %s165 = ssub.s32 %s15, 1
        %s166 = sand.u32 %s42, 1
        %s167 = scalar_lea.sflag [#allocation3], %s166
        %s168 = sand.u32 %s42, 1
        %s169 = smul.addr %s168, 128
        %s170 = scalar_lea.vmem [#allocation2], %s169
        // Predicated region
        $region29: #{tpu_custom_call.1} parent=27 // pred_check
          %p171 = pneg %p55
        $region30: #{tpu_custom_call.1} parent=27 // pred_check_branch
          %173 = sbr.rel (%p171) target = $region32
        $region31: #{tpu_custom_call.1} parent=27 // pred_region
          %174 = dma.done %s167, 2048
        $region32: #{tpu_custom_call.1} parent=27 // pred_fallthru
          _
        // Predicated region
        $region33: #{tpu_custom_call.1} parent=27 // pred_check
          %p175 = pneg %p76
        $region34: #{tpu_custom_call.1} parent=27 // pred_check_branch
          %177 = sbr.rel (%p175) target = $region36
        $region35: #{tpu_custom_call.1} parent=27 // pred_region
          %178 = dma.done [#allocation6], 6144
        $region36: #{tpu_custom_call.1} parent=27 // pred_fallthru
          _
        %s179 = sand.u32 %s42, 1
        %s180 = scalar_lea.sflag [#allocation3], %s179
        %s181 = sand.u32 %s42, 1
        %s182 = smul.addr %s181, 128
        %s183 = scalar_lea.vmem [#allocation2], %s182
        %p184 = pneg %p55
        %p185 = pneg %p52
        %p186 = pneg %p76
        %p187 = pneg %p73
        %p188 = pneg %p104
        %p189 = pneg %p101
        %s190 = sand.u32 %s91, 1
        %s191 = scalar_lea.sflag [#allocation4], %s190
        %s192 = sand.u32 %s91, 1
        %s193 = smul.addr %s192, 384
        %s194 = scalar_lea.vmem [#allocation7], %s193
        %s195 = smul.u32 16, %s25
        %s196 = smul.u32 16, %s25
        %v197 = vld [vmem:[%s170] sm:$0xff]
        %v198 = vld [vmem:[%s170 + $0x8] sm:$0xff]
        %v199 = vld [vmem:[%s170 + $0x10] sm:$0xff]
        %v200 = vld [vmem:[%s170 + $0x18] sm:$0xff]
        %v201 = vld [vmem:[%s170 + $0x20] sm:$0xff]
        %v202 = vld [vmem:[%s170 + $0x28] sm:$0xff]
        %v203 = vld [vmem:[%s170 + $0x30] sm:$0xff]
        %v204 = vld [vmem:[%s170 + $0x38] sm:$0xff]
        %v205 = vld [vmem:[%s170 + $0x40] sm:$0xff]
        %v206 = vld [vmem:[%s170 + $0x48] sm:$0xff]
        %v207 = vld [vmem:[%s170 + $0x50] sm:$0xff]
        %v208 = vld [vmem:[%s170 + $0x58] sm:$0xff]
        %v209 = vld [vmem:[%s170 + $0x60] sm:$0xff]
        %v210 = vld [vmem:[%s170 + $0x68] sm:$0xff]
        %v211 = vld [vmem:[%s170 + $0x70] sm:$0xff]
        %v212 = vld [vmem:[%s170 + $0x78] sm:$0xff]
        %v213 = vld [vmem:[#allocation5] sm:$0xff]
        %v214 = vld [vmem:[#allocation5 + $0x8] sm:$0xff]
        %v215 = vld [vmem:[#allocation5 + $0x10] sm:$0xff]
        %v216 = vld [vmem:[#allocation5 + $0x18] sm:$0xff]
        %v217 = vld [vmem:[#allocation5 + $0x20] sm:$0xff]
        %v218 = vld [vmem:[#allocation5 + $0x28] sm:$0xff]
        %v219 = vld [vmem:[#allocation5 + $0x30] sm:$0xff]
        %v220 = vld [vmem:[#allocation5 + $0x38] sm:$0xff]
        %v221 = vld [vmem:[#allocation5 + $0x40] sm:$0xff]
        %v222 = vld [vmem:[#allocation5 + $0x48] sm:$0xff]
        %v223 = vld [vmem:[#allocation5 + $0x50] sm:$0xff]
        %v224 = vld [vmem:[#allocation5 + $0x58] sm:$0xff]
        %v225 = vld [vmem:[#allocation5 + $0x60] sm:$0xff]
        %v226 = vld [vmem:[#allocation5 + $0x68] sm:$0xff]
        %v227 = vld [vmem:[#allocation5 + $0x70] sm:$0xff]
        %v228 = vld [vmem:[#allocation5 + $0x78] sm:$0xff]
        %v229 = vld [vmem:[#allocation5 + $0x80] sm:$0xff]
        %v230 = vld [vmem:[#allocation5 + $0x88] sm:$0xff]
        %v231 = vld [vmem:[#allocation5 + $0x90] sm:$0xff]
        %v232 = vld [vmem:[#allocation5 + $0x98] sm:$0xff]
        %v233 = vld [vmem:[#allocation5 + $0xa0] sm:$0xff]
        %v234 = vld [vmem:[#allocation5 + $0xa8] sm:$0xff]
        %v235 = vld [vmem:[#allocation5 + $0xb0] sm:$0xff]
        %v236 = vld [vmem:[#allocation5 + $0xb8] sm:$0xff]
        %v237 = vld [vmem:[#allocation5 + $0xc0] sm:$0xff]
        %v238 = vld [vmem:[#allocation5 + $0xc8] sm:$0xff]
        %v239 = vld [vmem:[#allocation5 + $0xd0] sm:$0xff]
        %v240 = vld [vmem:[#allocation5 + $0xd8] sm:$0xff]
        %v241 = vld [vmem:[#allocation5 + $0xe0] sm:$0xff]
        %v242 = vld [vmem:[#allocation5 + $0xe8] sm:$0xff]
        %v243 = vld [vmem:[#allocation5 + $0xf0] sm:$0xff]
        %v244 = vld [vmem:[#allocation5 + $0xf8] sm:$0xff]
        %v245 = vld [vmem:[#allocation5 + $0x100] sm:$0xff]
        %v246 = vld [vmem:[#allocation5 + $0x108] sm:$0xff]
        %v247 = vld [vmem:[#allocation5 + $0x110] sm:$0xff]
        %v248 = vld [vmem:[#allocation5 + $0x118] sm:$0xff]
        %v249 = vld [vmem:[#allocation5 + $0x120] sm:$0xff]
        %v250 = vld [vmem:[#allocation5 + $0x128] sm:$0xff]
        %v251 = vld [vmem:[#allocation5 + $0x130] sm:$0xff]
        %v252 = vld [vmem:[#allocation5 + $0x138] sm:$0xff]
        %v253 = vld [vmem:[#allocation5 + $0x140] sm:$0xff]
        %v254 = vld [vmem:[#allocation5 + $0x148] sm:$0xff]
        %v255 = vld [vmem:[#allocation5 + $0x150] sm:$0xff]
        %v256 = vld [vmem:[#allocation5 + $0x158] sm:$0xff]
        %v257 = vld [vmem:[#allocation5 + $0x160] sm:$0xff]
        %v258 = vld [vmem:[#allocation5 + $0x168] sm:$0xff]
        %v259 = vld [vmem:[#allocation5 + $0x170] sm:$0xff]
        %v260 = vld [vmem:[#allocation5 + $0x178] sm:$0xff]
        %261 = vmatprep.subr.mxu0 0.0
        %262 = vmatpush1.xpose.msra.mxu0 %v228
        %263 = vmatprep.subr.mxu0 0.0
        %264 = vmatpush1.xpose.msra.mxu0 %v227
        %265 = vmatprep.subr.mxu0 0.0
        %266 = vmatpush1.xpose.msra.mxu0 %v226
        %267 = vmatprep.subr.mxu0 0.0
        %268 = vmatpush1.xpose.msra.mxu0 %v225
        %269 = vmatprep.subr.mxu0 0.0
        %270 = vmatpush1.xpose.msra.mxu0 %v224
        %271 = vmatprep.subr.mxu0 0.0
        %272 = vmatpush1.xpose.msra.mxu0 %v223
        %273 = vmatprep.subr.mxu0 0.0
        %274 = vmatpush1.xpose.msra.mxu0 %v222
        %275 = vmatprep.subr.mxu0 0.0
        %276 = vmatpush1.xpose.msra.mxu0 %v221
        %277 = vmatprep.subr.mxu0 0.0
        %278 = vmatpush1.xpose.msra.mxu0 %v220
        %279 = vmatprep.subr.mxu0 0.0
        %280 = vmatpush1.xpose.msra.mxu0 %v219
        %281 = vmatprep.subr.mxu0 0.0
        %282 = vmatpush1.xpose.msra.mxu0 %v218
        %283 = vmatprep.subr.mxu0 0.0
        %284 = vmatpush1.xpose.msra.mxu0 %v217
        %285 = vmatprep.subr.mxu0 0.0
        %286 = vmatpush1.xpose.msra.mxu0 %v216
        %287 = vmatprep.subr.mxu0 0.0
        %288 = vmatpush1.xpose.msra.mxu0 %v215
        %289 = vmatprep.subr.mxu0 0.0
        %290 = vmatpush1.xpose.msra.mxu0 %v214
        %291 = vmatprep.subr.mxu0 0.0
        %292 = vmatpush1.xpose.msra.mxu0 %v213
        %293 = vmatprep.subr.mxu0 0.0
        %294 = vmatpush2.xpose.msra.mxu0 %v244
        %295 = vmatprep.subr.mxu0 0.0
        %296 = vmatpush2.xpose.msra.mxu0 %v243
        %297 = vmatprep.subr.mxu0 0.0
        %298 = vmatpush2.xpose.msra.mxu0 %v242
        %299 = vmatprep.subr.mxu0 0.0
        %300 = vmatpush2.xpose.msra.mxu0 %v241
        %301 = vmatprep.subr.mxu0 0.0
        %302 = vmatpush2.xpose.msra.mxu0 %v240
        %303 = vmatprep.subr.mxu0 0.0
        %304 = vmatpush2.xpose.msra.mxu0 %v239
        %305 = vmatprep.subr.mxu0 0.0
        %306 = vmatpush2.xpose.msra.mxu0 %v238
        %307 = vmatprep.subr.mxu0 0.0
        %308 = vmatpush2.xpose.msra.mxu0 %v237
        %309 = vmatprep.subr.mxu0 0.0
        %310 = vmatpush2.xpose.msra.mxu0 %v236
        %311 = vmatprep.subr.mxu0 0.0
        %312 = vmatpush2.xpose.msra.mxu0 %v235
        %313 = vmatprep.subr.mxu0 0.0
        %314 = vmatpush2.xpose.msra.mxu0 %v234
        %315 = vmatprep.subr.mxu0 0.0
        %316 = vmatpush2.xpose.msra.mxu0 %v233
        %317 = vmatprep.subr.mxu0 0.0
        %318 = vmatpush2.xpose.msra.mxu0 %v232
        %319 = vmatprep.subr.mxu0 0.0
        %320 = vmatpush2.xpose.msra.mxu0 %v231
        %321 = vmatprep.subr.mxu0 0.0
        %322 = vmatpush2.xpose.msra.mxu0 %v230
        %323 = vmatprep.subr.mxu0 0.0
        %324 = vmatpush2.xpose.msra.mxu0 %v229
        %325 = vmatprep.mubr.f32.mxu0 0.0
        %326 = vmatmul.mubr.f32.gmra.mxu0 %v197
        %v327 = vpop.f32.mrf.mxu0
        %v328 = vadd.f32 0.0, %v327
        %v329 = vpop.f32.mrf.mxu0
        %v330 = vadd.f32 0.0, %v329
        %331 = vmatprep.mubr.f32.mxu0 0.0
        %332 = vmatmul.mubr.f32.gmra.mxu0 %v198
        %v333 = vpop.f32.mrf.mxu0
        %v334 = vadd.f32 0.0, %v333
        %v335 = vpop.f32.mrf.mxu0
        %v336 = vadd.f32 0.0, %v335
        %337 = vmatprep.mubr.f32.mxu0 0.0
        %338 = vmatmul.mubr.f32.gmra.mxu0 %v199
        %v339 = vpop.f32.mrf.mxu0
        %v340 = vadd.f32 0.0, %v339
        %v341 = vpop.f32.mrf.mxu0
        %v342 = vadd.f32 0.0, %v341
        %343 = vmatprep.mubr.f32.mxu0 0.0
        %344 = vmatmul.mubr.f32.gmra.mxu0 %v200
        %v345 = vpop.f32.mrf.mxu0
        %v346 = vadd.f32 0.0, %v345
        %v347 = vpop.f32.mrf.mxu0
        %v348 = vadd.f32 0.0, %v347
        %349 = vmatprep.mubr.f32.mxu0 0.0
        %350 = vmatmul.mubr.f32.gmra.mxu0 %v201
        %v351 = vpop.f32.mrf.mxu0
        %v352 = vadd.f32 0.0, %v351
        %v353 = vpop.f32.mrf.mxu0
        %v354 = vadd.f32 0.0, %v353
        %355 = vmatprep.mubr.f32.mxu0 0.0
        %356 = vmatmul.mubr.f32.gmra.mxu0 %v202
        %v357 = vpop.f32.mrf.mxu0
        %v358 = vadd.f32 0.0, %v357
        %v359 = vpop.f32.mrf.mxu0
        %v360 = vadd.f32 0.0, %v359
        %361 = vmatprep.mubr.f32.mxu0 0.0
        %362 = vmatmul.mubr.f32.gmra.mxu0 %v203
        %v363 = vpop.f32.mrf.mxu0
        %v364 = vadd.f32 0.0, %v363
        %v365 = vpop.f32.mrf.mxu0
        %v366 = vadd.f32 0.0, %v365
        %367 = vmatprep.mubr.f32.mxu0 0.0
        %368 = vmatmul.mubr.f32.gmra.mxu0 %v204
        %v369 = vpop.f32.mrf.mxu0
        %v370 = vadd.f32 0.0, %v369
        %v371 = vpop.f32.mrf.mxu0
        %v372 = vadd.f32 0.0, %v371
        %373 = vmatprep.mubr.f32.mxu0 0.0
        %374 = vmatmul.mubr.f32.gmra.mxu0 %v205
        %v375 = vpop.f32.mrf.mxu0
        %v376 = vadd.f32 0.0, %v375
        %v377 = vpop.f32.mrf.mxu0
        %v378 = vadd.f32 0.0, %v377
        %379 = vmatprep.mubr.f32.mxu0 0.0
        %380 = vmatmul.mubr.f32.gmra.mxu0 %v206
        %v381 = vpop.f32.mrf.mxu0
        %v382 = vadd.f32 0.0, %v381
        %v383 = vpop.f32.mrf.mxu0
        %v384 = vadd.f32 0.0, %v383
        %385 = vmatprep.mubr.f32.mxu0 0.0
        %386 = vmatmul.mubr.f32.gmra.mxu0 %v207
        %v387 = vpop.f32.mrf.mxu0
        %v388 = vadd.f32 0.0, %v387
        %v389 = vpop.f32.mrf.mxu0
        %v390 = vadd.f32 0.0, %v389
        %391 = vmatprep.mubr.f32.mxu0 0.0
        %392 = vmatmul.mubr.f32.gmra.mxu0 %v208
        %v393 = vpop.f32.mrf.mxu0
        %v394 = vadd.f32 0.0, %v393
        %v395 = vpop.f32.mrf.mxu0
        %v396 = vadd.f32 0.0, %v395
        %397 = vmatprep.mubr.f32.mxu0 0.0
        %398 = vmatmul.mubr.f32.gmra.mxu0 %v209
        %v399 = vpop.f32.mrf.mxu0
        %v400 = vadd.f32 0.0, %v399
        %v401 = vpop.f32.mrf.mxu0
        %v402 = vadd.f32 0.0, %v401
        %403 = vmatprep.mubr.f32.mxu0 0.0
        %404 = vmatmul.mubr.f32.gmra.mxu0 %v210
        %v405 = vpop.f32.mrf.mxu0
        %v406 = vadd.f32 0.0, %v405
        %v407 = vpop.f32.mrf.mxu0
        %v408 = vadd.f32 0.0, %v407
        %409 = vmatprep.mubr.f32.mxu0 0.0
        %410 = vmatmul.mubr.f32.gmra.mxu0 %v211
        %v411 = vpop.f32.mrf.mxu0
        %v412 = vadd.f32 0.0, %v411
        %v413 = vpop.f32.mrf.mxu0
        %v414 = vadd.f32 0.0, %v413
        %415 = vmatprep.mubr.f32.mxu0 0.0
        %416 = vmatmul.mubr.f32.gmra.mxu0 %v212
        %v417 = vpop.f32.mrf.mxu0
        %v418 = vadd.f32 0.0, %v417
        %v419 = vpop.f32.mrf.mxu0
        %v420 = vadd.f32 0.0, %v419
        %421 = vdwg.mxu0
        %422 = vmatprep.subr.mxu0 0.0
        %423 = vmatpush1.xpose.msra.mxu0 %v260
        %424 = vmatprep.subr.mxu0 0.0
        %425 = vmatpush1.xpose.msra.mxu0 %v259
        %426 = vmatprep.subr.mxu0 0.0
        %427 = vmatpush1.xpose.msra.mxu0 %v258
        %428 = vmatprep.subr.mxu0 0.0
        %429 = vmatpush1.xpose.msra.mxu0 %v257
        %430 = vmatprep.subr.mxu0 0.0
        %431 = vmatpush1.xpose.msra.mxu0 %v256
        %432 = vmatprep.subr.mxu0 0.0
        %433 = vmatpush1.xpose.msra.mxu0 %v255
        %434 = vmatprep.subr.mxu0 0.0
        %435 = vmatpush1.xpose.msra.mxu0 %v254
        %436 = vmatprep.subr.mxu0 0.0
        %437 = vmatpush1.xpose.msra.mxu0 %v253
        %438 = vmatprep.subr.mxu0 0.0
        %439 = vmatpush1.xpose.msra.mxu0 %v252
        %440 = vmatprep.subr.mxu0 0.0
        %441 = vmatpush1.xpose.msra.mxu0 %v251
        %442 = vmatprep.subr.mxu0 0.0
        %443 = vmatpush1.xpose.msra.mxu0 %v250
        %444 = vmatprep.subr.mxu0 0.0
        %445 = vmatpush1.xpose.msra.mxu0 %v249
        %446 = vmatprep.subr.mxu0 0.0
        %447 = vmatpush1.xpose.msra.mxu0 %v248
        %448 = vmatprep.subr.mxu0 0.0
        %449 = vmatpush1.xpose.msra.mxu0 %v247
        %450 = vmatprep.subr.mxu0 0.0
        %451 = vmatpush1.xpose.msra.mxu0 %v246
        %452 = vmatprep.subr.mxu0 0.0
        %453 = vmatpush1.xpose.msra.mxu0 %v245
        %454 = vmatprep.subr.mxu0 0.0
        %455 = vmatpush2.xpose.msra.mxu0 0.0
        %456 = vmatprep.subr.mxu0 0.0
        %457 = vmatpush2.xpose.msra.mxu0 0.0
        %458 = vmatprep.subr.mxu0 0.0
        %459 = vmatpush2.xpose.msra.mxu0 0.0
        %460 = vmatprep.subr.mxu0 0.0
        %461 = vmatpush2.xpose.msra.mxu0 0.0
        %462 = vmatprep.subr.mxu0 0.0
        %463 = vmatpush2.xpose.msra.mxu0 0.0
        %464 = vmatprep.subr.mxu0 0.0
        %465 = vmatpush2.xpose.msra.mxu0 0.0
        %466 = vmatprep.subr.mxu0 0.0
        %467 = vmatpush2.xpose.msra.mxu0 0.0
        %468 = vmatprep.subr.mxu0 0.0
        %469 = vmatpush2.xpose.msra.mxu0 0.0
        %470 = vmatprep.subr.mxu0 0.0
        %471 = vmatpush2.xpose.msra.mxu0 0.0
        %472 = vmatprep.subr.mxu0 0.0
        %473 = vmatpush2.xpose.msra.mxu0 0.0
        %474 = vmatprep.subr.mxu0 0.0
        %475 = vmatpush2.xpose.msra.mxu0 0.0
        %476 = vmatprep.subr.mxu0 0.0
        %477 = vmatpush2.xpose.msra.mxu0 0.0
        %478 = vmatprep.subr.mxu0 0.0
        %479 = vmatpush2.xpose.msra.mxu0 0.0
        %480 = vmatprep.subr.mxu0 0.0
        %481 = vmatpush2.xpose.msra.mxu0 0.0
        %482 = vmatprep.subr.mxu0 0.0
        %483 = vmatpush2.xpose.msra.mxu0 0.0
        %484 = vmatprep.subr.mxu0 0.0
        %485 = vmatpush2.xpose.msra.mxu0 0.0
        %486 = vmatprep.mubr.f32.mxu0 0.0
        %487 = vmatmul.mubr.f32.gmra.mxu0 %v197
        %v488 = vpop.f32.mrf.mxu0
        %v489 = vadd.f32 0.0, %v488
        %v490 = vpop.f32.mrf.mxu0
        %491 = vmatprep.mubr.f32.mxu0 0.0
        %492 = vmatmul.mubr.f32.gmra.mxu0 %v198
        %v493 = vpop.f32.mrf.mxu0
        %v494 = vadd.f32 0.0, %v493
        %v495 = vpop.f32.mrf.mxu0
        %496 = vmatprep.mubr.f32.mxu0 0.0
        %497 = vmatmul.mubr.f32.gmra.mxu0 %v199
        %v498 = vpop.f32.mrf.mxu0
        %v499 = vadd.f32 0.0, %v498
        %v500 = vpop.f32.mrf.mxu0
        %501 = vmatprep.mubr.f32.mxu0 0.0
        %502 = vmatmul.mubr.f32.gmra.mxu0 %v200
        %v503 = vpop.f32.mrf.mxu0
        %v504 = vadd.f32 0.0, %v503
        %v505 = vpop.f32.mrf.mxu0
        %506 = vmatprep.mubr.f32.mxu0 0.0
        %507 = vmatmul.mubr.f32.gmra.mxu0 %v201
        %v508 = vpop.f32.mrf.mxu0
        %v509 = vadd.f32 0.0, %v508
        %v510 = vpop.f32.mrf.mxu0
        %511 = vmatprep.mubr.f32.mxu0 0.0
        %512 = vmatmul.mubr.f32.gmra.mxu0 %v202
        %v513 = vpop.f32.mrf.mxu0
        %v514 = vadd.f32 0.0, %v513
        %v515 = vpop.f32.mrf.mxu0
        %516 = vmatprep.mubr.f32.mxu0 0.0
        %517 = vmatmul.mubr.f32.gmra.mxu0 %v203
        %v518 = vpop.f32.mrf.mxu0
        %v519 = vadd.f32 0.0, %v518
        %v520 = vpop.f32.mrf.mxu0
        %521 = vmatprep.mubr.f32.mxu0 0.0
        %522 = vmatmul.mubr.f32.gmra.mxu0 %v204
        %v523 = vpop.f32.mrf.mxu0
        %v524 = vadd.f32 0.0, %v523
        %v525 = vpop.f32.mrf.mxu0
        %526 = vmatprep.mubr.f32.mxu0 0.0
        %527 = vmatmul.mubr.f32.gmra.mxu0 %v205
        %v528 = vpop.f32.mrf.mxu0
        %v529 = vadd.f32 0.0, %v528
        %v530 = vpop.f32.mrf.mxu0
        %531 = vmatprep.mubr.f32.mxu0 0.0
        %532 = vmatmul.mubr.f32.gmra.mxu0 %v206
        %v533 = vpop.f32.mrf.mxu0
        %v534 = vadd.f32 0.0, %v533
        %v535 = vpop.f32.mrf.mxu0
        %536 = vmatprep.mubr.f32.mxu0 0.0
        %537 = vmatmul.mubr.f32.gmra.mxu0 %v207
        %v538 = vpop.f32.mrf.mxu0
        %v539 = vadd.f32 0.0, %v538
        %v540 = vpop.f32.mrf.mxu0
        %541 = vmatprep.mubr.f32.mxu0 0.0
        %542 = vmatmul.mubr.f32.gmra.mxu0 %v208
        %v543 = vpop.f32.mrf.mxu0
        %v544 = vadd.f32 0.0, %v543
        %v545 = vpop.f32.mrf.mxu0
        %546 = vmatprep.mubr.f32.mxu0 0.0
        %547 = vmatmul.mubr.f32.gmra.mxu0 %v209
        %v548 = vpop.f32.mrf.mxu0
        %v549 = vadd.f32 0.0, %v548
        %v550 = vpop.f32.mrf.mxu0
        %551 = vmatprep.mubr.f32.mxu0 0.0
        %552 = vmatmul.mubr.f32.gmra.mxu0 %v210
        %v553 = vpop.f32.mrf.mxu0
        %v554 = vadd.f32 0.0, %v553
        %v555 = vpop.f32.mrf.mxu0
        %556 = vmatprep.mubr.f32.mxu0 0.0
        %557 = vmatmul.mubr.f32.gmra.mxu0 %v211
        %v558 = vpop.f32.mrf.mxu0
        %v559 = vadd.f32 0.0, %v558
        %v560 = vpop.f32.mrf.mxu0
        %561 = vmatprep.mubr.f32.mxu0 0.0
        %562 = vmatmul.mubr.f32.gmra.mxu0 %v212
        %v563 = vpop.f32.mrf.mxu0
        %v564 = vadd.f32 0.0, %v563
        %v565 = vpop.f32.mrf.mxu0
        %566 = vdwg.mxu0
        %567 = vst [vmem:[%s194] sm:$0xff] %v328
        %568 = vst [vmem:[%s194 + $0x8] sm:$0xff] %v330
        %569 = vst [vmem:[%s194 + $0x10] sm:$0xff] %v489
        %570 = vst [vmem:[%s194 + $0x18] sm:$0xff] %v334
        %571 = vst [vmem:[%s194 + $0x20] sm:$0xff] %v336
        %572 = vst [vmem:[%s194 + $0x28] sm:$0xff] %v494
        %573 = vst [vmem:[%s194 + $0x30] sm:$0xff] %v340
        %574 = vst [vmem:[%s194 + $0x38] sm:$0xff] %v342
        %575 = vst [vmem:[%s194 + $0x40] sm:$0xff] %v499
        %576 = vst [vmem:[%s194 + $0x48] sm:$0xff] %v346
        %577 = vst [vmem:[%s194 + $0x50] sm:$0xff] %v348
        %578 = vst [vmem:[%s194 + $0x58] sm:$0xff] %v504
        %579 = vst [vmem:[%s194 + $0x60] sm:$0xff] %v352
        %580 = vst [vmem:[%s194 + $0x68] sm:$0xff] %v354
        %581 = vst [vmem:[%s194 + $0x70] sm:$0xff] %v509
        %582 = vst [vmem:[%s194 + $0x78] sm:$0xff] %v358
        %583 = vst [vmem:[%s194 + $0x80] sm:$0xff] %v360
        %584 = vst [vmem:[%s194 + $0x88] sm:$0xff] %v514
        %585 = vst [vmem:[%s194 + $0x90] sm:$0xff] %v364
        %586 = vst [vmem:[%s194 + $0x98] sm:$0xff] %v366
        %587 = vst [vmem:[%s194 + $0xa0] sm:$0xff] %v519
        %588 = vst [vmem:[%s194 + $0xa8] sm:$0xff] %v370
        %589 = vst [vmem:[%s194 + $0xb0] sm:$0xff] %v372
        %590 = vst [vmem:[%s194 + $0xb8] sm:$0xff] %v524
        %591 = vst [vmem:[%s194 + $0xc0] sm:$0xff] %v376
        %592 = vst [vmem:[%s194 + $0xc8] sm:$0xff] %v378
        %593 = vst [vmem:[%s194 + $0xd0] sm:$0xff] %v529
        %594 = vst [vmem:[%s194 + $0xd8] sm:$0xff] %v382
        %595 = vst [vmem:[%s194 + $0xe0] sm:$0xff] %v384
        %596 = vst [vmem:[%s194 + $0xe8] sm:$0xff] %v534
        %597 = vst [vmem:[%s194 + $0xf0] sm:$0xff] %v388
        %598 = vst [vmem:[%s194 + $0xf8] sm:$0xff] %v390
        %599 = vst [vmem:[%s194 + $0x100] sm:$0xff] %v539
        %600 = vst [vmem:[%s194 + $0x108] sm:$0xff] %v394
        %601 = vst [vmem:[%s194 + $0x110] sm:$0xff] %v396
        %602 = vst [vmem:[%s194 + $0x118] sm:$0xff] %v544
        %603 = vst [vmem:[%s194 + $0x120] sm:$0xff] %v400
        %604 = vst [vmem:[%s194 + $0x128] sm:$0xff] %v402
        %605 = vst [vmem:[%s194 + $0x130] sm:$0xff] %v549
        %606 = vst [vmem:[%s194 + $0x138] sm:$0xff] %v406
        %607 = vst [vmem:[%s194 + $0x140] sm:$0xff] %v408
        %608 = vst [vmem:[%s194 + $0x148] sm:$0xff] %v554
        %609 = vst [vmem:[%s194 + $0x150] sm:$0xff] %v412
        %610 = vst [vmem:[%s194 + $0x158] sm:$0xff] %v414
        %611 = vst [vmem:[%s194 + $0x160] sm:$0xff] %v559
        %612 = vst [vmem:[%s194 + $0x168] sm:$0xff] %v418
        %613 = vst [vmem:[%s194 + $0x170] sm:$0xff] %v420
        %614 = vst [vmem:[%s194 + $0x178] sm:$0xff] %v564
        %s615 = sand.u32 %s91, 1
        %s616 = scalar_lea.sflag [#allocation4], %s615
        %s617 = sand.u32 %s91, 1
        %s618 = smul.addr %s617, 384
        %s619 = scalar_lea.vmem [#allocation7], %s618
        // Predicated region
        $region37: #{tpu_custom_call.1} parent=27 // pred_check
          %p620 = pneg %p101
        $region38: #{tpu_custom_call.1} parent=27 // pred_check_branch
          %622 = sbr.rel (%p620) target = $region40
        $region39: #{tpu_custom_call.1} parent=27 // pred_region
          %s623 = smul.u32 16, %s25
          %s625 = ssub.s32 6144, 6144
          %626 = vsyncadd %s616, %s625
          %s627 = smul.addr %s623, 3
          %s628 = smul.addr %s24, 48
          %s629 = sadd.s32 %s627, %s628
          %s630 = smul.addr %s629, 128
          %s631 = scalar_lea.hbm %s2, %s630
          %s632 = sshll.u32 %s619, 4
          %s633 = int_to_ptr.vmem [resolvable:$true] %s632
          %638 = dma.vmem_to_hbm [thread:$0]  %s633, 6144, %s631, %s616, 384, 384, 24
        $region40: #{tpu_custom_call.1} parent=27 // pred_fallthru
          _
      $region28: #{tpu_custom_call.1} parent=5 // pred_fallthru
        _
      %p639 = scmp.le.s32.totalorder 2, %s15
      // Predicated region
      $region41: #{tpu_custom_call.1} parent=5 // pred_check
        %p640 = pneg %p639
      $region42: #{tpu_custom_call.1} parent=5 // pred_check_branch
        %642 = sbr.rel (%p640) target = $region44
      $region43: #{tpu_custom_call.1} parent=5 // pred_region
        %s643 = ssub.s32 %s15, 2
        // Predicated region
        $region45: #{tpu_custom_call.1} parent=43 // pred_check
          %p644 = pneg %p107
        $region46: #{tpu_custom_call.1} parent=43 // pred_check_branch
          %646 = sbr.rel (%p644) target = $region48
        $region47: #{tpu_custom_call.1} parent=43 // pred_region
          %s647 = sand.u32 %s92, 1
          %s648 = scalar_lea.sflag [#allocation4], %s647
          %s649 = sand.u32 %s92, 1
          %s650 = smul.addr %s649, 384
          %s651 = scalar_lea.vmem [#allocation7], %s650
          %652 = dma.done %s648, 6144
        $region48: #{tpu_custom_call.1} parent=43 // pred_fallthru
          _
      $region44: #{tpu_custom_call.1} parent=5 // pred_fallthru
        _
    $region6: #{tpu_custom_call.1} parent=1 // loop_footer
      %s19 = sadd.s32 1, %s15
    $region7: #{tpu_custom_call.1} parent=1 // loop_footer_branch
      %14 = sbr.rel target = $region3
    $region8: #{tpu_custom_call.1} parent=1 // loop_exit
      _
    %653 = vsyncpa [#allocation3], 1
    %s654 = scalar_lea.sflag [#allocation3], 1
    %655 = vsyncpa %s654, 1
    %656 = vsyncpa [#allocation6], 1
    %657 = vsyncpa [#allocation4], 1
    %s658 = scalar_lea.sflag [#allocation4], 1
    %659 = vsyncpa %s658, 1

</llo_original>
